<compile_context>
chip_gen: v7x
topology: tpu7x:2x2x1
jax: 0.10.0
libtpu: 0.0.40
codegen_flags: <defaults>
</compile_context>

<pallas_src>
import functools

import jax
import jax.numpy as jnp
from jax.experimental import pallas as pl
from jax.experimental.pallas import tpu as pltpu

LN_EPS = 1e-5  # PyTorch nn.LayerNorm default


def _round_up(a, m):
    return -(-a // m) * m


def _ln_relu(h, apply_norm):
    """LayerNorm(no affine) over features (centered two-pass stats) then ReLU."""
    if apply_norm:  # static: original batch > 1
        mean = jnp.mean(h, axis=-1, keepdims=True)
        c = h - mean
        var = jnp.mean(c * c, axis=-1, keepdims=True)
        h = c * jax.lax.rsqrt(var + LN_EPS)
    return jnp.maximum(h, 0.0)


def mlp_kernel(*refs, nl, apply_norm):
    if nl > 0:
        x_ref, w0_ref, b0_ref, wh_ref, bh_ref, wf_ref, bf_ref, o_ref = refs
    else:
        x_ref, w0_ref, b0_ref, wf_ref, bf_ref, o_ref = refs
        wh_ref = bh_ref = None

    cdt = w0_ref.dtype  # bf16 when use_bf16=True, else f32; accumulation is f32.

    # First layer: Linear(ni, nu) -> LN -> ReLU  (x already in cdt from wrapper)
    h = jnp.dot(x_ref[...], w0_ref[...],
                preferred_element_type=jnp.float32) + b0_ref[...]
    h = _ln_relu(h, apply_norm)

    # Hidden layers: nl x (Linear(nu, nu) -> LN -> ReLU)
    for i in range(nl):
        h = jnp.dot(h.astype(cdt), wh_ref[i],
                    preferred_element_type=jnp.float32) + bh_ref[i]
        h = _ln_relu(h, apply_norm)

    # Output layer: Linear(nu, out_pad) (columns beyond 2*ni are zero padding)
    out = jnp.dot(h.astype(cdt), wf_ref[...],
                  preferred_element_type=jnp.float32) + bf_ref[...]
    o_ref[...] = out.astype(o_ref.dtype)


def mlp_forward(x, params, *, nl, block_b=None, use_bf16=True,
                single_buffer_weights=None):
    """Run the fused MLP. x: [B, ni] f32. Returns [B, 2*ni] f32."""
    w0, b0, wh, bh, wf, bf = params
    B, ni = x.shape
    nu = w0.shape[1]
    out_dim = wf.shape[1]

    # --- Lane-dense output: pad final-layer columns to a multiple of 128. ---
    # Safe ONLY for the last Linear (no LayerNorm follows it).  Hidden width nu
    # must NOT be padded: LN(affine=False) divides by the feature count.
    out_pad = _round_up(out_dim, 128)
    if out_pad != out_dim:
        wf = jnp.pad(wf, ((0, 0), (0, out_pad - out_dim)))
        bf = jnp.pad(bf, ((0, 0), (0, out_pad - out_dim)))

    # --- Batch tile selection (multiple of 8 sublanes). ---
    if block_b is None:
        block_b = 128 if nu >= 512 else 512
    TB = min(block_b, _round_up(B, 8))
    if B >= 16:
        # Keep >=2 batch tiles so ("parallel",) can shard across v7x's 2 TCs.
        TB = min(TB, _round_up((B + 1) // 2, 8))
    TB = max(8, (TB // 8) * 8)
    Bp = _round_up(B, TB)
    grid = (Bp // TB,)

    # --- Compute dtype: bf16 weights AND activations into the MXU. ---
    wdt = jnp.bfloat16 if use_bf16 else jnp.float32
    w0c, whc, wfc = w0.astype(wdt), wh.astype(wdt), wf.astype(wdt)

    xc = x
    if Bp != B:
        # Padded zero rows flow through LN/ReLU harmlessly and are sliced off.
        xc = jnp.pad(xc, ((0, Bp - B), (0, 0)))
    xc = xc.astype(wdt)  # halves the x HBM->VMEM DMA bytes on the bf16 path

    # --- VMEM budgeting (weights resident via constant index maps). ---
    itm = jnp.dtype(wdt).itemsize
    weight_bytes = ((ni * nu + nl * nu * nu + nu * out_pad) * itm
                    + ((1 + nl) * nu + out_pad) * 4)          # biases stay f32
    act_bytes = TB * ni * itm + TB * out_pad * 4              # one x+out tile buffer
    scratch_bytes = 4 * TB * nu * 4                           # live h + temporaries
    headroom = 8 << 20

    try:
        phys = int(pltpu.get_tpu_info().vmem_capacity_bytes)
    except Exception:
        phys = 64 << 20  # conservative: v7x per-TC physical VMEM
    cap = int(phys * 0.85)

    # Weights are fetched once (constant index maps); single-buffer them only
    # when double-buffering would exceed the VMEM budget (matters on v7x).
    if single_buffer_weights is None:
        single_buffer_weights = (2 * weight_bytes + 2 * act_bytes
                                 + scratch_bytes + headroom) > cap
    wbuf = 1 if single_buffer_weights else 2
    w_kw = dict(pipeline_mode=pl.Buffered(1)) if single_buffer_weights else {}

    needed = wbuf * weight_bytes + 2 * act_bytes + scratch_bytes + headroom
    vmem_limit = int(min(cap, max(needed, 32 << 20)))

    # TODO(synk): if wbuf*weight_bytes still exceeds the VMEM cap (very large
    # nu*nl on v7x's 64 MiB VMEM), stream wh one layer at a time via pl.ANY +
    # pltpu.make_async_copy ping-pong, overlapping layer i+1's weight DMA with
    # layer i's matmul, instead of keeping wh fully resident.

    const2 = lambda i: (0, 0)
    const3 = lambda i: (0, 0, 0)

    in_specs = [
        pl.BlockSpec((TB, ni), lambda i: (i, 0)),       # x tile: pipelined
        pl.BlockSpec((ni, nu), const2, **w_kw),         # weights: VMEM-resident
        pl.BlockSpec((1, nu), const2, **w_kw),
    ]
    args = [xc, w0c, b0]
    if nl > 0:
        in_specs += [pl.BlockSpec((nl, nu, nu), const3, **w_kw),
                     pl.BlockSpec((nl, 1, nu), const3, **w_kw)]
        args += [whc, bh]
    in_specs += [pl.BlockSpec((nu, out_pad), const2, **w_kw),
                 pl.BlockSpec((1, out_pad), const2, **w_kw)]
    args += [wfc, bf]

    flops = 2 * Bp * (ni * nu + nl * nu * nu + nu * out_pad)
    bytes_accessed = int(Bp * ni * itm + weight_bytes + Bp * out_pad * 4)
    transcendentals = Bp * (1 + nl)  # one rsqrt per row per normalized layer

    kernel = functools.partial(mlp_kernel, nl=nl, apply_norm=(B > 1))

    out = pl.pallas_call(
        kernel,
        out_shape=jax.ShapeDtypeStruct((Bp, out_pad), jnp.float32),
        grid_spec=pltpu.PrefetchScalarGridSpec(
            num_scalar_prefetch=0,
            grid=grid,
            in_specs=in_specs,
            out_specs=pl.BlockSpec((TB, out_pad), lambda i: (i, 0)),
        ),
        compiler_params=pltpu.CompilerParams(
            dimension_semantics=("parallel",),
            vmem_limit_bytes=vmem_limit),
        cost_estimate=pl.CostEstimate(
            flops=flops,
            transcendentals=transcendentals,
            bytes_accessed=bytes_accessed),
    )(*args)
    return out[:B, :out_dim]


def init_params(key, ni, nu, nl, zero_final=True):
    """PyTorch nn.Linear default init: U(-1/sqrt(fan_in), 1/sqrt(fan_in))."""
    keys = jax.random.split(key, 3 + nl)

    def linear(k, fan_in, fan_out):
        kw, kb = jax.random.split(k)
        bound = 1.0 / jnp.sqrt(fan_in)
        w = jax.random.uniform(kw, (fan_in, fan_out), jnp.float32, -bound, bound)
        b = jax.random.uniform(kb, (1, fan_out), jnp.float32, -bound, bound)
        return w, b

    w0, b0 = linear(keys[0], ni, nu)
    whs, bhs = [], []
    for i in range(nl):
        w, b = linear(keys[1 + i], nu, nu)
        whs.append(w)
        bhs.append(b)
    if nl > 0:
        wh = jnp.stack(whs)               # [nl, nu, nu]
        bh = jnp.stack(bhs)               # [nl, 1, nu]
    else:
        wh = jnp.zeros((0, nu, nu), jnp.float32)
        bh = jnp.zeros((0, 1, nu), jnp.float32)
    if zero_final:
        # Final layer zero-initialized (nn.init.zeros_) -- module-faithful.
        wf = jnp.zeros((nu, 2 * ni), jnp.float32)
        bf = jnp.zeros((1, 2 * ni), jnp.float32)
    else:
        # Non-zero final layer used only to make the numerical check non-trivial.
        wf, bf = linear(keys[-1], nu, 2 * ni)
    return w0, b0, wh, bh, wf, bf


def mlp_reference(x, params, *, nl):
    """Pure-JAX f32 reference (matches PyTorch semantics)."""
    w0, b0, wh, bh, wf, bf = params
    apply_norm = x.shape[0] > 1

    def ln_relu(h):
        if apply_norm:
            m = jnp.mean(h, axis=-1, keepdims=True)
            v = jnp.mean((h - m) ** 2, axis=-1, keepdims=True)
            h = (h - m) / jnp.sqrt(v + LN_EPS)
        return jnp.maximum(h, 0.0)

    h = ln_relu(x @ w0 + b0)
    for i in range(nl):
        h = ln_relu(h @ wh[i] + bh[i])
    return h @ wf + bf


if __name__ == "__main__":
    ni, nu, nl = 16, 32, 2   # small shapes; bn='layer' (LayerNorm path)
    key = jax.random.PRNGKey(0)
    kx, kx2, kp, kp2 = jax.random.split(key, 4)

    # --- Test 1: module-faithful params (zero-init final layer), B=8 ---
    B = 8
    x = jax.random.normal(kx, (B, ni), jnp.float32)
    params = init_params(kp, ni, nu, nl, zero_final=True)
    out = jax.block_until_ready(mlp_forward(x, params, nl=nl))
    assert out.shape == (B, 2 * ni), out.shape
    assert jnp.allclose(out, jnp.zeros_like(out)), "zero-init final layer must yield zeros"

    # --- Test 2: non-trivial final layer, f32 path (tight tolerance) ---
    params_t = init_params(kp2, ni, nu, nl, zero_final=False)
    out_f32 = jax.block_until_ready(mlp_forward(x, params_t, nl=nl, use_bf16=False))
    ref = mlp_reference(x, params_t, nl=nl)
    assert jnp.allclose(out_f32, ref, atol=1e-4, rtol=1e-4), \
        float(jnp.max(jnp.abs(out_f32 - ref)))

    # --- Test 3: bf16 path + batch padding + lane-padded output + grid=4 ---
    B2 = 50
    x2 = jax.random.normal(kx2, (B2, ni), jnp.float32)
    out_bf16 = jax.block_until_ready(
        mlp_forward(x2, params_t, nl=nl, block_b=16, use_bf16=True))
    ref2 = mlp_reference(x2, params_t, nl=nl)
    assert out_bf16.shape == (B2, 2 * ni), out_bf16.shape
    assert jnp.allclose(out_bf16, ref2, atol=5e-2, rtol=5e-2), \
        float(jnp.max(jnp.abs(out_bf16 - ref2)))

    # --- Test 4: nl=0 path (single Linear -> LN -> ReLU -> Linear) ---
    params_0 = init_params(kp, ni, nu, 0, zero_final=False)
    out_0 = jax.block_until_ready(mlp_forward(x, params_0, nl=0, use_bf16=False))
    ref_0 = mlp_reference(x, params_0, nl=0)
    assert jnp.allclose(out_0, ref_0, atol=1e-4, rtol=1e-4), \
        float(jnp.max(jnp.abs(out_0 - ref_0)))

    print("KERNEL_OK")
</pallas_src>

<mosaic_0001>
module attributes {stable_mosaic.version = 11 : i64} {
  func.func @mlp_kernel(%arg0: i32, %arg1: memref<8x16xbf16, #tpu.memory_space<vmem>>, %arg2: memref<16x32xbf16, #tpu.memory_space<vmem>>, %arg3: memref<1x32xf32, #tpu.memory_space<vmem>>, %arg4: memref<2x32x32xbf16, #tpu.memory_space<vmem>>, %arg5: memref<2x1x32xf32, #tpu.memory_space<vmem>>, %arg6: memref<32x128xbf16, #tpu.memory_space<vmem>>, %arg7: memref<1x128xf32, #tpu.memory_space<vmem>>, %arg8: memref<8x128xf32, #tpu.memory_space<vmem>>) attributes {dimension_semantics = [#tpu.dimension_semantics<parallel>], iteration_bounds = array<i64: 1>, scalar_prefetch = 0 : i64, scratch_operands = 0 : i64, tpu.core_type = #tpu.core_type<tc>, window_params = [{transform_indices = @transform_0, window_bounds = array<i64: 8, 16>}, {pipeline_mode = #tpu.pipeline_mode<synchronous>, transform_indices = @transform_1, window_bounds = array<i64: 16, 32>}, {pipeline_mode = #tpu.pipeline_mode<synchronous>, transform_indices = @transform_2, window_bounds = array<i64: 1, 32>}, {pipeline_mode = #tpu.pipeline_mode<synchronous>, transform_indices = @transform_3, window_bounds = array<i64: 2, 32, 32>}, {pipeline_mode = #tpu.pipeline_mode<synchronous>, transform_indices = @transform_4, window_bounds = array<i64: 2, 1, 32>}, {pipeline_mode = #tpu.pipeline_mode<synchronous>, transform_indices = @transform_5, window_bounds = array<i64: 32, 128>}, {pipeline_mode = #tpu.pipeline_mode<synchronous>, transform_indices = @transform_6, window_bounds = array<i64: 1, 128>}, {transform_indices = @transform_7, window_bounds = array<i64: 8, 128>}]} {
    %c0 = arith.constant 0 : index
    %c0_0 = arith.constant 0 : index
    %0 = vector.load %arg1[%c0, %c0_0] : memref<8x16xbf16, #tpu.memory_space<vmem>>, vector<8x16xbf16>
    %c0_1 = arith.constant 0 : index
    %c0_2 = arith.constant 0 : index
    %1 = vector.load %arg2[%c0_1, %c0_2] : memref<16x32xbf16, #tpu.memory_space<vmem>>, vector<16x32xbf16>
    %cst = arith.constant dense<0.000000e+00> : vector<8x32xf32>
    %2 = tpu.matmul %0, %1, %cst {dimension_numbers = #tpu.dot_dimension_numbers<[1], [0], [0], [1], [0, 0, 1, 1], [], []>} : vector<8x16xbf16>, vector<16x32xbf16>, vector<8x32xf32> -> vector<8x32xf32>
    %c0_3 = arith.constant 0 : index
    %c0_4 = arith.constant 0 : index
    %3 = vector.load %arg3[%c0_3, %c0_4] : memref<1x32xf32, #tpu.memory_space<vmem>>, vector<1x32xf32>
    %4 = vector.broadcast %3 : vector<1x32xf32> to vector<8x32xf32>
    %5 = arith.addf %2, %4 : vector<8x32xf32>
    %cst_5 = arith.constant dense<0.000000e+00> : vector<8xf32>
    %6 = vector.multi_reduction <add>, %5, %cst_5 [1] : vector<8x32xf32> to vector<8xf32>
    %7 = vector.shape_cast %6 : vector<8xf32> to vector<8x1xf32>
    %cst_6 = arith.constant 3.200000e+01 : f32
    %8 = vector.broadcast %cst_6 : f32 to vector<8x1xf32>
    %9 = arith.divf %7, %8 : vector<8x1xf32>
    %10 = vector.broadcast %9 : vector<8x1xf32> to vector<8x32xf32>
    %11 = arith.subf %5, %10 : vector<8x32xf32>
    %12 = arith.mulf %11, %11 : vector<8x32xf32>
    %cst_7 = arith.constant dense<0.000000e+00> : vector<8xf32>
    %13 = vector.multi_reduction <add>, %12, %cst_7 [1] : vector<8x32xf32> to vector<8xf32>
    %14 = vector.shape_cast %13 : vector<8xf32> to vector<8x1xf32>
    %cst_8 = arith.constant 3.200000e+01 : f32
    %15 = vector.broadcast %cst_8 : f32 to vector<8x1xf32>
    %16 = arith.divf %14, %15 : vector<8x1xf32>
    %cst_9 = arith.constant 9.99999974E-6 : f32
    %17 = vector.broadcast %cst_9 : f32 to vector<8x1xf32>
    %18 = arith.addf %16, %17 : vector<8x1xf32>
    %19 = math.rsqrt %18 : vector<8x1xf32>
    %20 = vector.broadcast %19 : vector<8x1xf32> to vector<8x32xf32>
    %21 = arith.mulf %11, %20 : vector<8x32xf32>
    %cst_10 = arith.constant 0.000000e+00 : f32
    %22 = vector.broadcast %cst_10 : f32 to vector<8x32xf32>
    %23 = arith.maximumf %21, %22 : vector<8x32xf32>
    %24 = arith.truncf %23 : vector<8x32xf32> to vector<8x32xbf16>
    %c0_11 = arith.constant 0 : index
    %c0_12 = arith.constant 0 : index
    %c0_13 = arith.constant 0 : index
    %25 = vector.load %arg4[%c0_11, %c0_12, %c0_13] : memref<2x32x32xbf16, #tpu.memory_space<vmem>>, vector<1x32x32xbf16>
    %26 = vector.shape_cast %25 : vector<1x32x32xbf16> to vector<32x32xbf16>
    %cst_14 = arith.constant dense<0.000000e+00> : vector<8x32xf32>
    %27 = tpu.matmul %24, %26, %cst_14 {dimension_numbers = #tpu.dot_dimension_numbers<[1], [0], [0], [1], [0, 0, 1, 1], [], []>} : vector<8x32xbf16>, vector<32x32xbf16>, vector<8x32xf32> -> vector<8x32xf32>
    %c0_15 = arith.constant 0 : index
    %c0_16 = arith.constant 0 : index
    %c0_17 = arith.constant 0 : index
    %28 = vector.load %arg5[%c0_15, %c0_16, %c0_17] : memref<2x1x32xf32, #tpu.memory_space<vmem>>, vector<1x1x32xf32>
    %29 = vector.shape_cast %28 : vector<1x1x32xf32> to vector<1x32xf32>
    %30 = vector.broadcast %29 : vector<1x32xf32> to vector<8x32xf32>
    %31 = arith.addf %27, %30 : vector<8x32xf32>
    %cst_18 = arith.constant dense<0.000000e+00> : vector<8xf32>
    %32 = vector.multi_reduction <add>, %31, %cst_18 [1] : vector<8x32xf32> to vector<8xf32>
    %33 = vector.shape_cast %32 : vector<8xf32> to vector<8x1xf32>
    %cst_19 = arith.constant 3.200000e+01 : f32
    %34 = vector.broadcast %cst_19 : f32 to vector<8x1xf32>
    %35 = arith.divf %33, %34 : vector<8x1xf32>
    %36 = vector.broadcast %35 : vector<8x1xf32> to vector<8x32xf32>
    %37 = arith.subf %31, %36 : vector<8x32xf32>
    %38 = arith.mulf %37, %37 : vector<8x32xf32>
    %cst_20 = arith.constant dense<0.000000e+00> : vector<8xf32>
    %39 = vector.multi_reduction <add>, %38, %cst_20 [1] : vector<8x32xf32> to vector<8xf32>
    %40 = vector.shape_cast %39 : vector<8xf32> to vector<8x1xf32>
    %cst_21 = arith.constant 3.200000e+01 : f32
    %41 = vector.broadcast %cst_21 : f32 to vector<8x1xf32>
    %42 = arith.divf %40, %41 : vector<8x1xf32>
    %cst_22 = arith.constant 9.99999974E-6 : f32
    %43 = vector.broadcast %cst_22 : f32 to vector<8x1xf32>
    %44 = arith.addf %42, %43 : vector<8x1xf32>
    %45 = math.rsqrt %44 : vector<8x1xf32>
    %46 = vector.broadcast %45 : vector<8x1xf32> to vector<8x32xf32>
    %47 = arith.mulf %37, %46 : vector<8x32xf32>
    %cst_23 = arith.constant 0.000000e+00 : f32
    %48 = vector.broadcast %cst_23 : f32 to vector<8x32xf32>
    %49 = arith.maximumf %47, %48 : vector<8x32xf32>
    %50 = arith.truncf %49 : vector<8x32xf32> to vector<8x32xbf16>
    %c1 = arith.constant 1 : index
    %c0_24 = arith.constant 0 : index
    %c0_25 = arith.constant 0 : index
    %51 = vector.load %arg4[%c1, %c0_24, %c0_25] : memref<2x32x32xbf16, #tpu.memory_space<vmem>>, vector<1x32x32xbf16>
    %52 = vector.shape_cast %51 : vector<1x32x32xbf16> to vector<32x32xbf16>
    %cst_26 = arith.constant dense<0.000000e+00> : vector<8x32xf32>
    %53 = tpu.matmul %50, %52, %cst_26 {dimension_numbers = #tpu.dot_dimension_numbers<[1], [0], [0], [1], [0, 0, 1, 1], [], []>} : vector<8x32xbf16>, vector<32x32xbf16>, vector<8x32xf32> -> vector<8x32xf32>
    %c1_27 = arith.constant 1 : index
    %c0_28 = arith.constant 0 : index
    %c0_29 = arith.constant 0 : index
    %54 = vector.load %arg5[%c1_27, %c0_28, %c0_29] : memref<2x1x32xf32, #tpu.memory_space<vmem>>, vector<1x1x32xf32>
    %55 = vector.shape_cast %54 : vector<1x1x32xf32> to vector<1x32xf32>
    %56 = vector.broadcast %55 : vector<1x32xf32> to vector<8x32xf32>
    %57 = arith.addf %53, %56 : vector<8x32xf32>
    %cst_30 = arith.constant dense<0.000000e+00> : vector<8xf32>
    %58 = vector.multi_reduction <add>, %57, %cst_30 [1] : vector<8x32xf32> to vector<8xf32>
    %59 = vector.shape_cast %58 : vector<8xf32> to vector<8x1xf32>
    %cst_31 = arith.constant 3.200000e+01 : f32
    %60 = vector.broadcast %cst_31 : f32 to vector<8x1xf32>
    %61 = arith.divf %59, %60 : vector<8x1xf32>
    %62 = vector.broadcast %61 : vector<8x1xf32> to vector<8x32xf32>
    %63 = arith.subf %57, %62 : vector<8x32xf32>
    %64 = arith.mulf %63, %63 : vector<8x32xf32>
    %cst_32 = arith.constant dense<0.000000e+00> : vector<8xf32>
    %65 = vector.multi_reduction <add>, %64, %cst_32 [1] : vector<8x32xf32> to vector<8xf32>
    %66 = vector.shape_cast %65 : vector<8xf32> to vector<8x1xf32>
    %cst_33 = arith.constant 3.200000e+01 : f32
    %67 = vector.broadcast %cst_33 : f32 to vector<8x1xf32>
    %68 = arith.divf %66, %67 : vector<8x1xf32>
    %cst_34 = arith.constant 9.99999974E-6 : f32
    %69 = vector.broadcast %cst_34 : f32 to vector<8x1xf32>
    %70 = arith.addf %68, %69 : vector<8x1xf32>
    %71 = math.rsqrt %70 : vector<8x1xf32>
    %72 = vector.broadcast %71 : vector<8x1xf32> to vector<8x32xf32>
    %73 = arith.mulf %63, %72 : vector<8x32xf32>
    %cst_35 = arith.constant 0.000000e+00 : f32
    %74 = vector.broadcast %cst_35 : f32 to vector<8x32xf32>
    %75 = arith.maximumf %73, %74 : vector<8x32xf32>
    %76 = arith.truncf %75 : vector<8x32xf32> to vector<8x32xbf16>
    %c0_36 = arith.constant 0 : index
    %c0_37 = arith.constant 0 : index
    %77 = vector.load %arg6[%c0_36, %c0_37] : memref<32x128xbf16, #tpu.memory_space<vmem>>, vector<32x128xbf16>
    %cst_38 = arith.constant dense<0.000000e+00> : vector<8x128xf32>
    %78 = tpu.matmul %76, %77, %cst_38 {dimension_numbers = #tpu.dot_dimension_numbers<[1], [0], [0], [1], [0, 0, 1, 1], [], []>} : vector<8x32xbf16>, vector<32x128xbf16>, vector<8x128xf32> -> vector<8x128xf32>
    %c0_39 = arith.constant 0 : index
    %c0_40 = arith.constant 0 : index
    %79 = vector.load %arg7[%c0_39, %c0_40] : memref<1x128xf32, #tpu.memory_space<vmem>>, vector<1x128xf32>
    %80 = vector.broadcast %79 : vector<1x128xf32> to vector<8x128xf32>
    %81 = arith.addf %78, %80 : vector<8x128xf32>
    %c0_41 = arith.constant 0 : index
    %c0_42 = arith.constant 0 : index
    %82 = vector.load %arg8[%c0_41, %c0_42] : memref<8x128xf32, #tpu.memory_space<vmem>>, vector<8x128xf32>
    tpu.vector_store %arg8[%c0_41, %c0_42], %81 {strides = array<i32>} : memref<8x128xf32, #tpu.memory_space<vmem>>, vector<8x128xf32>,
    return
  }
  func.func @transform_0(%arg0: i32) -> (i32, i32) {
    %c0_i32 = arith.constant 0 : i32
    %c0_i32_0 = arith.constant 0 : i32
    return %arg0, %c0_i32 : i32, i32
  }
  func.func @transform_1(%arg0: i32) -> (i32, i32) {
    %c0_i32 = arith.constant 0 : i32
    %c0_i32_0 = arith.constant 0 : i32
    %c0_i32_1 = arith.constant 0 : i32
    return %c0_i32, %c0_i32_0 : i32, i32
  }
  func.func @transform_2(%arg0: i32) -> (i32, i32) {
    %c0_i32 = arith.constant 0 : i32
    %c0_i32_0 = arith.constant 0 : i32
    %c0_i32_1 = arith.constant 0 : i32
    return %c0_i32, %c0_i32_0 : i32, i32
  }
  func.func @transform_3(%arg0: i32) -> (i32, i32, i32) {
    %c0_i32 = arith.constant 0 : i32
    %c0_i32_0 = arith.constant 0 : i32
    %c0_i32_1 = arith.constant 0 : i32
    %c0_i32_2 = arith.constant 0 : i32
    return %c0_i32, %c0_i32_0, %c0_i32_1 : i32, i32, i32
  }
  func.func @transform_4(%arg0: i32) -> (i32, i32, i32) {
    %c0_i32 = arith.constant 0 : i32
    %c0_i32_0 = arith.constant 0 : i32
    %c0_i32_1 = arith.constant 0 : i32
    %c0_i32_2 = arith.constant 0 : i32
    return %c0_i32, %c0_i32_0, %c0_i32_1 : i32, i32, i32
  }
  func.func @transform_5(%arg0: i32) -> (i32, i32) {
    %c0_i32 = arith.constant 0 : i32
    %c0_i32_0 = arith.constant 0 : i32
    %c0_i32_1 = arith.constant 0 : i32
    return %c0_i32, %c0_i32_0 : i32, i32
  }
  func.func @transform_6(%arg0: i32) -> (i32, i32) {
    %c0_i32 = arith.constant 0 : i32
    %c0_i32_0 = arith.constant 0 : i32
    %c0_i32_1 = arith.constant 0 : i32
    return %c0_i32, %c0_i32_0 : i32, i32
  }
  func.func @transform_7(%arg0: i32) -> (i32, i32) {
    %c0_i32 = arith.constant 0 : i32
    %c0_i32_0 = arith.constant 0 : i32
    return %arg0, %c0_i32 : i32, i32
  }
}

</mosaic_0001>

<llo_original>
// kernel: tpu_custom_call.1
$region0: #{tpu_custom_call.1}
  #allocation0 [shape = 'u32[]', space=smem, size = 0x4, offset = 0x4, fixed_abs, tag = 'smem constant byte address 0x4 - core index']
  #allocation1 [shape = 'u32[144,128]{1,0:T(1,128)}', space=vmem, size = 0x12000, scoped, tag = 'internal scratch']
  %s0 = inlined_call_operand.hbm [shape: bf16[8,16], index: 0, kind: input, shape index: {}]
  %s1 = inlined_call_operand.hbm [shape: bf16[16,32], index: 1, kind: input, shape index: {}]
  %s2 = inlined_call_operand.hbm [shape: f32[1,32], index: 2, kind: input, shape index: {}]
  %s3 = inlined_call_operand.hbm [shape: bf16[2,32,32], index: 3, kind: input, shape index: {}]
  %s4 = inlined_call_operand.vmem [shape: f32[2,1,32], index: 4, kind: input, shape index: {}]
  %s5 = inlined_call_operand.vmem [shape: bf16[32,128], index: 5, kind: input, shape index: {}]
  %s6 = inlined_call_operand.vmem [shape: f32[1,128], index: 6, kind: input, shape index: {}]
  %s7 = inlined_call_operand.hbm [shape: f32[8,128], index: 7, kind: output, shape index: {}]
  %s8 = sld [smem:[#allocation0]]
  $region54: #{tpu_custom_call.1} parent=0
    _
  %s10 = ssub.s32 1, %s8
  %s11 = scalar_select 0, %s10, %s8
  $region1: #{tpu_custom_call.1} parent=0
    #allocation2 [shape = 'u8[2048]{0}', space=vmem, size = 0x800, scoped, tag = 'input window, operand 0, single buffered']
    #allocation3 [shape = 's32[1]{0}', space=sflag, size = 0x4, scoped, tag = 'scoped memory for tpu_custom_call.1']
    #allocation4 [shape = 's32[1]{0}', space=sflag, size = 0x4, scoped, tag = 'scoped memory for tpu_custom_call.1']
    #allocation5 [shape = 'u8[4096]{0}', space=vmem, size = 0x1000, scoped, tag = 'input window, operand 1, single buffered']
    #allocation6 [shape = 's32[1]{0}', space=sflag, size = 0x4, scoped, tag = 'scoped memory for tpu_custom_call.1']
    #allocation7 [shape = 'u8[512]{0}', space=vmem, size = 0x400, scoped, tag = 'input window, operand 2, single buffered']
    #allocation8 [shape = 'u8[16384]{0}', space=vmem, size = 0x4000, scoped, tag = 'input window, operand 3, single buffered']
    #allocation9 [shape = 's32[1]{0}', space=sflag, size = 0x4, scoped, tag = 'scoped memory for tpu_custom_call.1']
    #allocation10 [shape = 'u8[4096]{0}', space=vmem, size = 0x1000, scoped, tag = 'output window, operand 0, single buffered']
    %12 = vsyncpa [#allocation3], 0
    %13 = vsyncpa [#allocation6], 0
    %14 = vsyncpa [#allocation9], 0
    %15 = vsyncpa [#allocation4], 0
    // Predicated region
    $region2: #{tpu_custom_call.1} parent=1 // pred_check
      _
    $region3: #{tpu_custom_call.1} parent=1 // pred_check_branch
      %17 = sbr.rel (0) target = $region5
    $region4: #{tpu_custom_call.1} parent=1 // pred_region
      %s19 = ssub.s32 64, 64
      %20 = vsyncadd [#allocation3], %s19
      %s22 = sshll.u32 [#allocation2], 4
      %s23 = int_to_ptr.vmem [resolvable:$true] %s22
      %25 = dma.hbm_to_vmem [thread:$0]  %s0, 64, %s23, [#allocation3]
    $region5: #{tpu_custom_call.1} parent=1 // pred_fallthru
      _
    // Predicated region
    $region6: #{tpu_custom_call.1} parent=1 // pred_check
      _
    $region7: #{tpu_custom_call.1} parent=1 // pred_check_branch
      %27 = sbr.rel (0) target = $region9
    $region8: #{tpu_custom_call.1} parent=1 // pred_region
      %s29 = ssub.s32 128, 128
      %30 = vsyncadd [#allocation6], %s29
      %s31 = sshll.u32 [#allocation5], 4
      %s32 = int_to_ptr.vmem [resolvable:$true] %s31
      %37 = dma.hbm_to_vmem [thread:$0]  %s1, 128, %s32, [#allocation6], 64, 64, 4
    $region9: #{tpu_custom_call.1} parent=1 // pred_fallthru
      _
    // Predicated region
    $region10: #{tpu_custom_call.1} parent=1 // pred_check
      _
    $region11: #{tpu_custom_call.1} parent=1 // pred_check_branch
      %39 = sbr.rel (0) target = $region13
    $region12: #{tpu_custom_call.1} parent=1 // pred_region
      %s41 = ssub.s32 16, 16
      %42 = vsyncadd [#allocation6], %s41
      %s44 = sshll.u32 [#allocation7], 4
      %s45 = int_to_ptr.vmem [resolvable:$true] %s44
      %47 = dma.hbm_to_vmem [thread:$0]  %s2, 16, %s45, [#allocation6]
    $region13: #{tpu_custom_call.1} parent=1 // pred_fallthru
      _
    // Predicated region
    $region14: #{tpu_custom_call.1} parent=1 // pred_check
      _
    $region15: #{tpu_custom_call.1} parent=1 // pred_check_branch
      %49 = sbr.rel (0) target = $region17
    $region16: #{tpu_custom_call.1} parent=1 // pred_region
      %s51 = ssub.s32 512, 512
      %52 = vsyncadd [#allocation9], %s51
      %s53 = sshll.u32 [#allocation8], 4
      %s54 = int_to_ptr.vmem [resolvable:$true] %s53
      %59 = dma.hbm_to_vmem [thread:$0]  %s3, 512, %s54, [#allocation9], 64, 64, 4
    $region17: #{tpu_custom_call.1} parent=1 // pred_fallthru
      _
    // Predicated region
    $region18: #{tpu_custom_call.1} parent=1 // pred_check
      _
    $region19: #{tpu_custom_call.1} parent=1 // pred_check_branch
      %61 = sbr.rel (0) target = $region21
    $region20: #{tpu_custom_call.1} parent=1 // pred_region
      _
    $region21: #{tpu_custom_call.1} parent=1 // pred_fallthru
      _
    // Predicated region
    $region22: #{tpu_custom_call.1} parent=1 // pred_check
      _
    $region23: #{tpu_custom_call.1} parent=1 // pred_check_branch
      %63 = sbr.rel (0) target = $region25
    $region24: #{tpu_custom_call.1} parent=1 // pred_region
      _
    $region25: #{tpu_custom_call.1} parent=1 // pred_fallthru
      _
    // Predicated region
    $region26: #{tpu_custom_call.1} parent=1 // pred_check
      _
    $region27: #{tpu_custom_call.1} parent=1 // pred_check_branch
      %65 = sbr.rel (0) target = $region29
    $region28: #{tpu_custom_call.1} parent=1 // pred_region
      _
    $region29: #{tpu_custom_call.1} parent=1 // pred_fallthru
      _
    // Predicated region
    $region30: #{tpu_custom_call.1} parent=1 // pred_check
      _
    $region31: #{tpu_custom_call.1} parent=1 // pred_check_branch
      %67 = sbr.rel (0) target = $region33
    $region32: #{tpu_custom_call.1} parent=1 // pred_region
      %68 = dma.done [#allocation3], 64
    $region33: #{tpu_custom_call.1} parent=1 // pred_fallthru
      _
    // Predicated region
    $region34: #{tpu_custom_call.1} parent=1 // pred_check
      _
    $region35: #{tpu_custom_call.1} parent=1 // pred_check_branch
      %70 = sbr.rel (0) target = $region37
    $region36: #{tpu_custom_call.1} parent=1 // pred_region
      %71 = dma.done [#allocation6], 128
    $region37: #{tpu_custom_call.1} parent=1 // pred_fallthru
      _
    // Predicated region
    $region38: #{tpu_custom_call.1} parent=1 // pred_check
      _
    $region39: #{tpu_custom_call.1} parent=1 // pred_check_branch
      %73 = sbr.rel (0) target = $region41
    $region40: #{tpu_custom_call.1} parent=1 // pred_region
      %74 = dma.done [#allocation6], 16
    $region41: #{tpu_custom_call.1} parent=1 // pred_fallthru
      _
    // Predicated region
    $region42: #{tpu_custom_call.1} parent=1 // pred_check
      _
    $region43: #{tpu_custom_call.1} parent=1 // pred_check_branch
      %76 = sbr.rel (0) target = $region45
    $region44: #{tpu_custom_call.1} parent=1 // pred_region
      %77 = dma.done [#allocation9], 512
    $region45: #{tpu_custom_call.1} parent=1 // pred_fallthru
      _
    %v79 = vld [vmem:[#allocation2] sm:$0xf]
    %v80 = vld [vmem:[#allocation5] sm:$0xf]
    %v81 = vld [vmem:[#allocation5 + $0x4] sm:$0xf]
    %v82 = vld [vmem:[#allocation7] sm:$0x1]
    %v84 = vlaneseq
    %v85 = vshrl.u32 %v84, 7
    %v86 = vsub.s32 0, %v85
    %v87 = vrot.slane %v82, %v86
    %v91 = vunpack.c.l.b16 %v80
    %v92 = vunpack.c.l.b16 %v81
    %v93 = vpack.c.b16 %v92, %v91
    %vm95 = vcmask 130048
    %v97 = vsel %vm95, %v79, 0
    %99 = vmatprep.subr.bf16.mxu0 0
    %100 = vmatpush1.bf16.msra.mxu0 %v93
    %101 = vmatprep.subr.bf16.mxu0 0
    %102 = vmatpush1.bf16.msra.mxu0 0
    %103 = vmatprep.subr.bf16.mxu0 0
    %104 = vmatpush1.bf16.msra.mxu0 0
    %105 = vmatprep.subr.bf16.mxu0 0
    %106 = vmatpush1.bf16.msra.mxu0 0
    %107 = vmatprep.subr.bf16.mxu0 0
    %108 = vmatpush1.bf16.msra.mxu0 0
    %109 = vmatprep.subr.bf16.mxu0 0
    %110 = vmatpush1.bf16.msra.mxu0 0
    %111 = vmatprep.subr.bf16.mxu0 0
    %112 = vmatpush1.bf16.msra.mxu0 0
    %113 = vmatprep.subr.bf16.mxu0 0
    %114 = vmatpush1.bf16.msra.mxu0 0
    %115 = vmatprep.subr.bf16.mxu0 0
    %116 = vmatpush1.bf16.msra.mxu0 0
    %117 = vmatprep.subr.bf16.mxu0 0
    %118 = vmatpush1.bf16.msra.mxu0 0
    %119 = vmatprep.subr.bf16.mxu0 0
    %120 = vmatpush1.bf16.msra.mxu0 0
    %121 = vmatprep.subr.bf16.mxu0 0
    %122 = vmatpush1.bf16.msra.mxu0 0
    %123 = vmatprep.subr.bf16.mxu0 0
    %124 = vmatpush1.bf16.msra.mxu0 0
    %125 = vmatprep.subr.bf16.mxu0 0
    %126 = vmatpush1.bf16.msra.mxu0 0
    %127 = vmatprep.subr.bf16.mxu0 0
    %128 = vmatpush1.bf16.msra.mxu0 0
    %129 = vmatprep.subr.bf16.mxu0 0
    %130 = vmatpush1.bf16.msra.mxu0 0
    %131 = vmatprep.mubr.bf16.mxu0 0
    %132 = vmatmul.mubr.bf16.gmra.mrb[0].mxu0 %v97
    %v133 = vpop.f32.mrb[0].mxu0
    %v134 = vadd.f32 %v87, %v133
    %v135 = vpop.f32.mrb[0].mxu0
    %v136 = vpop.f32.mrb[0].mxu0
    %v137 = vpop.f32.mrb[0].mxu0
    %138 = vdwg.mxu0
    %vm139 = vcmask 261120
    %v140 = vsel %vm139, %v134, 0.0
    %141 = vadd.xlane.f32.xlu0 %v140
    %v142 = vpop.xlane.xlu0 %141
    %v143 = vrcp.pop 32.0
    %v144 = vmul.f32 %v142, %v143
    %v145 = vsub.f32 %v134, %v144
    %v146 = vmul.f32 %v145, %v145
    %v147 = vsel %vm139, %v146, 0.0
    %148 = vadd.xlane.f32.xlu0 %v147
    %v149 = vpop.xlane.xlu0 %148
    %v150 = vmul.f32 %v149, %v143
    %v151 = vadd.f32 %v150, 1e-05
    %v152 = vrsqrt.pop %v151
    %v153 = vmul.f32 %v145, %v152
    %v154 = vmax.f32 %v153, 0.0
    %v155 = vpack.c.bf16 %v154, %v154
    %v156 = vld [vmem:[#allocation8] sm:$0xf]
    %v157 = vld [vmem:[#allocation8 + $0x4] sm:$0xf]
    %v158 = vld [vmem:[#allocation8 + $0x8] sm:$0xf]
    %v159 = vld [vmem:[#allocation8 + $0xc] sm:$0xf]
    %v160 = vld [vmem:[%s4] sm:$0x1]
    %v162 = vlaneseq
    %v163 = vshrl.u32 %v162, 7
    %v164 = vsub.s32 0, %v163
    %v165 = vrot.slane %v160, %v164
    %v171 = vunpack.c.l.b16 %v156
    %v172 = vunpack.c.l.b16 %v157
    %v173 = vunpack.c.l.b16 %v158
    %v174 = vunpack.c.l.b16 %v159
    %v175 = vpack.c.b16 %v172, %v171
    %v176 = vpack.c.b16 %v174, %v173
    %v180 = vsel %vm139, %v155, 0
    %182 = vmatprep.subr.bf16.mxu0 0
    %183 = vmatpush1.bf16.msra.mxu0 %v175
    %184 = vmatprep.subr.bf16.mxu0 0
    %185 = vmatpush1.bf16.msra.mxu0 %v176
    %186 = vmatprep.subr.bf16.mxu0 0
    %187 = vmatpush1.bf16.msra.mxu0 0
    %188 = vmatprep.subr.bf16.mxu0 0
    %189 = vmatpush1.bf16.msra.mxu0 0
    %190 = vmatprep.subr.bf16.mxu0 0
    %191 = vmatpush1.bf16.msra.mxu0 0
    %192 = vmatprep.subr.bf16.mxu0 0
    %193 = vmatpush1.bf16.msra.mxu0 0
    %194 = vmatprep.subr.bf16.mxu0 0
    %195 = vmatpush1.bf16.msra.mxu0 0
    %196 = vmatprep.subr.bf16.mxu0 0
    %197 = vmatpush1.bf16.msra.mxu0 0
    %198 = vmatprep.subr.bf16.mxu0 0
    %199 = vmatpush1.bf16.msra.mxu0 0
    %200 = vmatprep.subr.bf16.mxu0 0
    %201 = vmatpush1.bf16.msra.mxu0 0
    %202 = vmatprep.subr.bf16.mxu0 0
    %203 = vmatpush1.bf16.msra.mxu0 0
    %204 = vmatprep.subr.bf16.mxu0 0
    %205 = vmatpush1.bf16.msra.mxu0 0
    %206 = vmatprep.subr.bf16.mxu0 0
    %207 = vmatpush1.bf16.msra.mxu0 0
    %208 = vmatprep.subr.bf16.mxu0 0
    %209 = vmatpush1.bf16.msra.mxu0 0
    %210 = vmatprep.subr.bf16.mxu0 0
    %211 = vmatpush1.bf16.msra.mxu0 0
    %212 = vmatprep.subr.bf16.mxu0 0
    %213 = vmatpush1.bf16.msra.mxu0 0
    %214 = vmatprep.mubr.bf16.mxu0 0
    %215 = vmatmul.mubr.bf16.gmra.mrb[0].mxu0 %v180
    %v216 = vpop.f32.mrb[0].mxu0
    %v217 = vadd.f32 %v165, %v216
    %v218 = vpop.f32.mrb[0].mxu0
    %v219 = vpop.f32.mrb[0].mxu0
    %v220 = vpop.f32.mrb[0].mxu0
    %221 = vdwg.mxu0
    %v222 = vsel %vm139, %v217, 0.0
    %223 = vadd.xlane.f32.xlu0 %v222
    %v224 = vpop.xlane.xlu0 %223
    %v225 = vmul.f32 %v224, %v143
    %v226 = vsub.f32 %v217, %v225
    %v227 = vmul.f32 %v226, %v226
    %v228 = vsel %vm139, %v227, 0.0
    %229 = vadd.xlane.f32.xlu0 %v228
    %v230 = vpop.xlane.xlu0 %229
    %v231 = vmul.f32 %v230, %v143
    %v232 = vadd.f32 %v231, 1e-05
    %v233 = vrsqrt.pop %v232
    %v234 = vmul.f32 %v226, %v233
    %v235 = vmax.f32 %v234, 0.0
    %v236 = vpack.c.bf16 %v235, %v235
    %s237 = scalar_lea.vmem [#allocation8], 16
    %v238 = vld [vmem:[%s237] sm:$0xf]
    %v239 = vld [vmem:[%s237 + $0x4] sm:$0xf]
    %v240 = vld [vmem:[%s237 + $0x8] sm:$0xf]
    %v241 = vld [vmem:[%s237 + $0xc] sm:$0xf]
    %s242 = scalar_lea.vmem %s4, 1
    %v243 = vld [vmem:[%s242] sm:$0x1]
    %v245 = vlaneseq
    %v246 = vshrl.u32 %v245, 7
    %v247 = vsub.s32 0, %v246
    %v248 = vrot.slane %v243, %v247
    %v254 = vunpack.c.l.b16 %v238
    %v255 = vunpack.c.l.b16 %v239
    %v256 = vunpack.c.l.b16 %v240
    %v257 = vunpack.c.l.b16 %v241
    %v258 = vpack.c.b16 %v255, %v254
    %v259 = vpack.c.b16 %v257, %v256
    %v263 = vsel %vm139, %v236, 0
    %265 = vmatprep.subr.bf16.mxu0 0
    %266 = vmatpush1.bf16.msra.mxu0 %v258
    %267 = vmatprep.subr.bf16.mxu0 0
    %268 = vmatpush1.bf16.msra.mxu0 %v259
    %269 = vmatprep.subr.bf16.mxu0 0
    %270 = vmatpush1.bf16.msra.mxu0 0
    %271 = vmatprep.subr.bf16.mxu0 0
    %272 = vmatpush1.bf16.msra.mxu0 0
    %273 = vmatprep.subr.bf16.mxu0 0
    %274 = vmatpush1.bf16.msra.mxu0 0
    %275 = vmatprep.subr.bf16.mxu0 0
    %276 = vmatpush1.bf16.msra.mxu0 0
    %277 = vmatprep.subr.bf16.mxu0 0
    %278 = vmatpush1.bf16.msra.mxu0 0
    %279 = vmatprep.subr.bf16.mxu0 0
    %280 = vmatpush1.bf16.msra.mxu0 0
    %281 = vmatprep.subr.bf16.mxu0 0
    %282 = vmatpush1.bf16.msra.mxu0 0
    %283 = vmatprep.subr.bf16.mxu0 0
    %284 = vmatpush1.bf16.msra.mxu0 0
    %285 = vmatprep.subr.bf16.mxu0 0
    %286 = vmatpush1.bf16.msra.mxu0 0
    %287 = vmatprep.subr.bf16.mxu0 0
    %288 = vmatpush1.bf16.msra.mxu0 0
    %289 = vmatprep.subr.bf16.mxu0 0
    %290 = vmatpush1.bf16.msra.mxu0 0
    %291 = vmatprep.subr.bf16.mxu0 0
    %292 = vmatpush1.bf16.msra.mxu0 0
    %293 = vmatprep.subr.bf16.mxu0 0
    %294 = vmatpush1.bf16.msra.mxu0 0
    %295 = vmatprep.subr.bf16.mxu0 0
    %296 = vmatpush1.bf16.msra.mxu0 0
    %297 = vmatprep.mubr.bf16.mxu0 0
    %298 = vmatmul.mubr.bf16.gmra.mrb[0].mxu0 %v263
    %v299 = vpop.f32.mrb[0].mxu0
    %v300 = vadd.f32 %v248, %v299
    %v301 = vpop.f32.mrb[0].mxu0
    %v302 = vpop.f32.mrb[0].mxu0
    %v303 = vpop.f32.mrb[0].mxu0
    %304 = vdwg.mxu0
    %v305 = vsel %vm139, %v300, 0.0
    %306 = vadd.xlane.f32.xlu0 %v305
    %v307 = vpop.xlane.xlu0 %306
    %v308 = vmul.f32 %v307, %v143
    %v309 = vsub.f32 %v300, %v308
    %v310 = vmul.f32 %v309, %v309
    %v311 = vsel %vm139, %v310, 0.0
    %312 = vadd.xlane.f32.xlu0 %v311
    %v313 = vpop.xlane.xlu0 %312
    %v314 = vmul.f32 %v313, %v143
    %v315 = vadd.f32 %v314, 1e-05
    %v316 = vrsqrt.pop %v315
    %v317 = vmul.f32 %v309, %v316
    %v318 = vmax.f32 %v317, 0.0
    %v319 = vpack.c.bf16 %v318, %v318
    %v320 = vld [vmem:[%s5] sm:$0xf]
    %v321 = vld [vmem:[%s5 + $0x4] sm:$0xf]
    %v322 = vld [vmem:[%s5 + $0x8] sm:$0xf]
    %v323 = vld [vmem:[%s5 + $0xc] sm:$0xf]
    %v324 = vld [vmem:[%s6] sm:$0x1]
    %v326 = vlaneseq
    %v327 = vshrl.u32 %v326, 7
    %v328 = vsub.s32 0, %v327
    %v329 = vrot.slane %v324, %v328
    %v335 = vunpack.c.l.b16 %v320
    %v336 = vunpack.c.l.b16 %v321
    %v337 = vunpack.c.l.b16 %v322
    %v338 = vunpack.c.l.b16 %v323
    %v339 = vpack.c.b16 %v336, %v335
    %v340 = vpack.c.b16 %v338, %v337
    %v344 = vsel %vm139, %v319, 0
    %346 = vmatprep.subr.bf16.mxu0 0
    %347 = vmatpush1.bf16.msra.mxu0 %v339
    %348 = vmatprep.subr.bf16.mxu0 0
    %349 = vmatpush1.bf16.msra.mxu0 %v340
    %350 = vmatprep.subr.bf16.mxu0 0
    %351 = vmatpush1.bf16.msra.mxu0 0
    %352 = vmatprep.subr.bf16.mxu0 0
    %353 = vmatpush1.bf16.msra.mxu0 0
    %354 = vmatprep.subr.bf16.mxu0 0
    %355 = vmatpush1.bf16.msra.mxu0 0
    %356 = vmatprep.subr.bf16.mxu0 0
    %357 = vmatpush1.bf16.msra.mxu0 0
    %358 = vmatprep.subr.bf16.mxu0 0
    %359 = vmatpush1.bf16.msra.mxu0 0
    %360 = vmatprep.subr.bf16.mxu0 0
    %361 = vmatpush1.bf16.msra.mxu0 0
    %362 = vmatprep.subr.bf16.mxu0 0
    %363 = vmatpush1.bf16.msra.mxu0 0
    %364 = vmatprep.subr.bf16.mxu0 0
    %365 = vmatpush1.bf16.msra.mxu0 0
    %366 = vmatprep.subr.bf16.mxu0 0
    %367 = vmatpush1.bf16.msra.mxu0 0
    %368 = vmatprep.subr.bf16.mxu0 0
    %369 = vmatpush1.bf16.msra.mxu0 0
    %370 = vmatprep.subr.bf16.mxu0 0
    %371 = vmatpush1.bf16.msra.mxu0 0
    %372 = vmatprep.subr.bf16.mxu0 0
    %373 = vmatpush1.bf16.msra.mxu0 0
    %374 = vmatprep.subr.bf16.mxu0 0
    %375 = vmatpush1.bf16.msra.mxu0 0
    %376 = vmatprep.subr.bf16.mxu0 0
    %377 = vmatpush1.bf16.msra.mxu0 0
    %378 = vmatprep.mubr.bf16.mxu0 0
    %379 = vmatmul.mubr.bf16.gmra.mrb[0].mxu0 %v344
    %v380 = vpop.f32.mrb[0].mxu0
    %v381 = vadd.f32 %v329, %v380
    %v382 = vpop.f32.mrb[0].mxu0
    %v383 = vpop.f32.mrb[0].mxu0
    %v384 = vpop.f32.mrb[0].mxu0
    %385 = vdwg.mxu0
    %386 = vst [vmem:[#allocation10] sm:$0xff] %v381
    // Predicated region
    $region46: #{tpu_custom_call.1} parent=1 // pred_check
      _
    $region47: #{tpu_custom_call.1} parent=1 // pred_check_branch
      %388 = sbr.rel (0) target = $region49
    $region48: #{tpu_custom_call.1} parent=1 // pred_region
      %s390 = ssub.s32 128, 128
      %391 = vsyncadd [#allocation4], %s390
      %s393 = sshll.u32 [#allocation10], 4
      %s394 = int_to_ptr.vmem [resolvable:$true] %s393
      %396 = dma.vmem_to_hbm [thread:$0]  %s394, 128, %s7, [#allocation4]
    $region49: #{tpu_custom_call.1} parent=1 // pred_fallthru
      _
    // Predicated region
    $region50: #{tpu_custom_call.1} parent=1 // pred_check
      _
    $region51: #{tpu_custom_call.1} parent=1 // pred_check_branch
      %398 = sbr.rel (0) target = $region53
    $region52: #{tpu_custom_call.1} parent=1 // pred_region
      %399 = dma.done [#allocation4], 128
    $region53: #{tpu_custom_call.1} parent=1 // pred_fallthru
      _
    %400 = vsyncpa [#allocation3], 1
    %401 = vsyncpa [#allocation6], 1
    %402 = vsyncpa [#allocation9], 1
    %403 = vsyncpa [#allocation4], 1

</llo_original>
